<compile_context>
chip_gen: v5e
topology: v5e:2x2
jax: 0.10.0
libtpu: 0.0.40
codegen_flags: <defaults>
</compile_context>

<pallas_src>
import jax
import jax.numpy as jnp
from jax.experimental import pallas as pl
from jax.experimental.pallas import tpu as pltpu


# ---------------------------------------------------------------------------
# Kernel
# ---------------------------------------------------------------------------
def head2_kernel(
    x1_ref,                # [TB, inf1] bf16   batch tile of backbone-1 features
    x2_ref,                # [TB, inf2] bf16   batch tile of backbone-2 features
    w1a_ref,               # [inf1, 512] bf16  first Linear (BN1 folded), x1 part
    w1b_ref,               # [inf2, 512] bf16  first Linear (BN1 folded), x2 part
    vec_ref,               # [3, 512]  f32     rows: b1 (folded), BN2 scale, BN2 shift
    w2_ref,                # [512, OP] bf16    second Linear (OP = out_f padded to 128)
    b2_ref,                # [1, OP]   f32
    out_ref,               # [TB, OP]  f32
    hid_ref,               # [TB, 512] f32/bf16
):
    # Linear(inf1+inf2, 512) with BN1 pre-folded, split over the two inputs.
    # bf16 operands, f32 accumulation on the MXU.
    h = jnp.dot(x1_ref[...], w1a_ref[...], preferred_element_type=jnp.float32)
    h = h + jnp.dot(x2_ref[...], w1b_ref[...], preferred_element_type=jnp.float32)

    vecs = vec_ref[...]                       # [3, 512] f32
    h = h + vecs[0:1, :]                      # folded bias

    # ReLU -> BatchNorm1d(512) (eval, folded) -> Dropout (identity in eval)
    h = jnp.maximum(h, 0.0)
    h = h * vecs[1:2, :] + vecs[2:3, :]
    hid_ref[...] = h.astype(hid_ref.dtype)

    # Linear(512, out_f) on a lane-dense (128-wide) padded output.
    out_ref[...] = (
        jnp.dot(h.astype(jnp.bfloat16), w2_ref[...],
                preferred_element_type=jnp.float32)
        + b2_ref[...]
    )


# ---------------------------------------------------------------------------
# Wrapper
# ---------------------------------------------------------------------------
def head2_forward(x1, x2, params, *, block_b=2048, hid_dtype=jnp.float32):
    """Head2 forward.  Returns (out[B, out_f], hid[B, 512])."""
    B, inf1 = x1.shape
    inf2 = x2.shape[1]
    H = params["w1a"].shape[1]            # 512
    OP = params["w2"].shape[1]            # out_f padded to a multiple of 128
    out_f = params["out_f"]

    # bf16 inputs: the matmul operands are bf16 anyway; casting in the wrapper
    # halves the x HBM read and removes the in-kernel f32->bf16 VPU pass.
    x1 = x1.astype(jnp.bfloat16)
    x2 = x2.astype(jnp.bfloat16)

    # Batch tile selection:
    #   * multiple of 16 (bf16 sublane packing of the MXU LHS),
    #   * as large as block_b allows (amortize ~0.35us per-step overhead),
    #   * at least 2 grid steps when the batch is big enough so the "parallel"
    #     batch axis can shard across v7x's two TensorCores.
    TB = min(block_b, max(B, 16))
    TB = max(16, (TB // 16) * 16)
    if B >= 32:
        half = (((B + 1) // 2) + 15) // 16 * 16   # ceil(B/2), rounded up to 16
        TB = min(TB, half)
    Bp = ((B + TB - 1) // TB) * TB
    if Bp != B:
        pad = Bp - B
        x1 = jnp.pad(x1, ((0, pad), (0, 0)))
        x2 = jnp.pad(x2, ((0, pad), (0, 0)))
    grid = (Bp // TB,)

    # Weights/params stay VMEM-resident across batch tiles (constant index_map).
    in_specs = [
        pl.BlockSpec((TB, inf1), lambda i: (i, 0)),   # x1 : tiled over batch
        pl.BlockSpec((TB, inf2), lambda i: (i, 0)),   # x2 : tiled over batch
        pl.BlockSpec((inf1, H), lambda i: (0, 0)),    # w1a
        pl.BlockSpec((inf2, H), lambda i: (0, 0)),    # w1b
        pl.BlockSpec((3, H), lambda i: (0, 0)),       # packed b1 / bn2 scale / shift
        pl.BlockSpec((H, OP), lambda i: (0, 0)),      # w2
        pl.BlockSpec((1, OP), lambda i: (0, 0)),      # b2
    ]
    out_specs = (
        pl.BlockSpec((TB, OP), lambda i: (i, 0)),     # out (lane-dense, 128-wide)
        pl.BlockSpec((TB, H), lambda i: (i, 0)),      # hid
    )

    hid_bytes = jnp.dtype(hid_dtype).itemsize

    # Scoped-VMEM estimate (double-buffered streams + resident params + slack)
    # so large tiles are safe against v5e's 16 MiB default scoped-VMEM limit;
    # capped at 48 MiB to stay inside v7x's 64 MiB physical VMEM.
    work = 2 * (TB * inf1 * 2 + TB * inf2 * 2 + TB * OP * 4 + TB * H * hid_bytes)
    work += 2 * ((inf1 + inf2) * H * 2 + H * OP * 2 + 3 * H * 4 + OP * 4)
    work += 2 * TB * H * 4                              # f32 intermediates headroom
    vmem_limit = int(min(max(32 << 20, 2 * work), 48 << 20))

    flops = 2 * Bp * (inf1 + inf2) * H + 2 * Bp * H * OP
    bytes_accessed = (
        Bp * (inf1 + inf2) * 2                           # x1, x2 (bf16)
        + (inf1 + inf2) * H * 2 + 3 * H * 4              # w1a/w1b + packed vec
        + H * OP * 2 + OP * 4                            # w2 + b2
        + Bp * OP * 4 + Bp * H * hid_bytes               # outputs
    )

    out_pad, hid_pad = pl.pallas_call(
        head2_kernel,
        out_shape=(
            jax.ShapeDtypeStruct((Bp, OP), jnp.float32),
            jax.ShapeDtypeStruct((Bp, H), hid_dtype),
        ),
        grid=grid,
        in_specs=in_specs,
        out_specs=out_specs,
        compiler_params=pltpu.CompilerParams(
            dimension_semantics=("parallel",),    # shards batch across TCs on v7x
            vmem_limit_bytes=vmem_limit,
        ),
        cost_estimate=pl.CostEstimate(
            flops=flops, transcendentals=0, bytes_accessed=int(bytes_accessed)
        ),
    )(x1, x2, params["w1a"], params["w1b"], params["vec3"],
      params["w2"], params["b2"])

    return out_pad[:B, :out_f], hid_pad[:B]


# ---------------------------------------------------------------------------
# Parameters (deterministic synthetic; same shapes/semantics as the module)
# ---------------------------------------------------------------------------
def make_params(key, inf1, inf2, out_f, hidden=512, eps=1e-5):
    ks = jax.random.split(key, 8)

    def bn_fold(kg, kb, n):
        gamma = 1.0 + 0.1 * jax.random.normal(kg, (n,), jnp.float32)
        beta = 0.1 * jax.random.normal(kb, (n,), jnp.float32)
        run_mean = jnp.zeros((n,), jnp.float32)    # PyTorch BN init (eval mode)
        run_var = jnp.ones((n,), jnp.float32)
        scale = gamma / jnp.sqrt(run_var + eps)
        shift = beta - run_mean * scale
        return scale, shift

    s1, t1 = bn_fold(ks[0], ks[1], inf1)           # BN1d(inf1)
    s2, t2 = bn_fold(ks[2], ks[3], inf2)           # BN1d(inf2)
    s3, t3 = bn_fold(ks[4], ks[5], hidden)         # BN1d(512)

    # nn.Linear(inf1+inf2, 512): weight [512, K], bias [512]
    w1_t = 0.02 * jax.random.normal(ks[6], (hidden, inf1 + inf2), jnp.float32)
    b1 = 0.01 * jnp.ones((hidden,), jnp.float32)
    w1 = w1_t.T                                     # [K, 512]

    # Fold BN1 into the first Linear:  (x*s + t) @ W = x @ (s[:,None]*W) + t @ W
    s_cat = jnp.concatenate([s1, s2], axis=0)       # [K]
    t_cat = jnp.concatenate([t1, t2], axis=0)       # [K]
    w1_folded = s_cat[:, None] * w1                 # [K, 512] f32
    b1_folded = b1 + t_cat @ w1                     # [512]    f32

    # Split the first Linear over the two inputs (concat eliminated in-kernel).
    w1a = w1_folded[:inf1].astype(jnp.bfloat16)     # [inf1, 512]
    w1b = w1_folded[inf1:].astype(jnp.bfloat16)     # [inf2, 512]

    # Pack folded bias + BN2 scale/shift into one small parameter array.
    vec3 = jnp.stack([b1_folded, s3, t3], axis=0)   # [3, 512] f32

    # nn.Linear(512, out_f): weight [out_f, 512], bias [out_f]
    w2_t = 0.02 * jax.random.normal(ks[7], (out_f, hidden), jnp.float32)
    b2 = 0.01 * jnp.ones((out_f,), jnp.float32)

    # Pad the output dimension to a multiple of 128 lanes (unmasked stores).
    OP = ((out_f + 127) // 128) * 128
    w2_pad = jnp.zeros((hidden, OP), jnp.float32).at[:, :out_f].set(w2_t.T)
    b2_pad = jnp.zeros((1, OP), jnp.float32).at[0, :out_f].set(b2)

    return {
        "w1a": w1a,                           # [inf1, 512] bf16 (BN1 folded)
        "w1b": w1b,                           # [inf2, 512] bf16 (BN1 folded)
        "vec3": vec3,                         # [3, 512]    f32  (b1, s3, t3)
        "w2": w2_pad.astype(jnp.bfloat16),    # [512, OP]   bf16 (zero-padded cols)
        "b2": b2_pad,                         # [1, OP]     f32
        "out_f": out_f,
    }


def head2_reference(x1, x2, p):
    """Pure-JAX reference (f32 math, same bf16-quantized weights)."""
    w1 = jnp.concatenate([p["w1a"], p["w1b"]], axis=0).astype(jnp.float32)
    x = jnp.concatenate([x1, x2], axis=1)
    h = x @ w1 + p["vec3"][0]
    h = jnp.maximum(h, 0.0)
    h = h * p["vec3"][1] + p["vec3"][2]
    out = h @ p["w2"].astype(jnp.float32) + p["b2"]
    return out[:, : p["out_f"]], h


# ---------------------------------------------------------------------------
if __name__ == "__main__":
    # FCN2 builds Head2(inf_1, inf_2, out_f=1); inputs are the flattened
    # backbone outputs (e.g. nn.Flatten of [B, 4, 8] -> 32 features).
    B, inf1, inf2, out_f = 64, 32, 32, 1

    key = jax.random.PRNGKey(0)
    k1, k2, kp = jax.random.split(key, 3)
    x1 = jax.random.normal(k1, (B, inf1), jnp.float32)
    x2 = jax.random.normal(k2, (B, inf2), jnp.float32)
    params = make_params(kp, inf1, inf2, out_f)

    # Default path: TB is clamped to ~B/2 so the toy problem still exercises
    # the pipelined, multi-tile grid (grid=(2,)).
    out, hid = head2_forward(x1, x2, params)
    jax.block_until_ready((out, hid))

    ref_out, ref_hid = head2_reference(x1, x2, params)
    # bf16 matmul operands with f32 accumulation -> ~1e-2 relative tolerance.
    assert out.shape == (B, out_f) and hid.shape == (B, 512)
    assert jnp.allclose(out, ref_out, atol=2e-2, rtol=2e-2)
    assert jnp.allclose(hid, ref_hid, atol=2e-2, rtol=2e-2)

    # Non-multiple-of-tile batch exercises the padding path.
    out2, hid2 = head2_forward(x1[:20], x2[:20], params, block_b=16)
    jax.block_until_ready((out2, hid2))
    r_out2, r_hid2 = head2_reference(x1[:20], x2[:20], params)
    assert jnp.allclose(out2, r_out2, atol=2e-2, rtol=2e-2)
    assert jnp.allclose(hid2, r_hid2, atol=2e-2, rtol=2e-2)

    # Optional bf16 hidden output (halves the dominant HBM writeback stream).
    out3, hid3 = head2_forward(x1, x2, params, hid_dtype=jnp.bfloat16)
    jax.block_until_ready((out3, hid3))
    assert hid3.dtype == jnp.bfloat16
    assert jnp.allclose(out3, ref_out, atol=2e-2, rtol=2e-2)
    assert jnp.allclose(hid3.astype(jnp.float32), ref_hid, atol=2e-2, rtol=2e-2)

    print("KERNEL_OK")
</pallas_src>

<mosaic_0001>
module attributes {stable_mosaic.version = 11 : i64} {
  func.func @head2_kernel(%arg0: i32, %arg1: memref<32x32xbf16, #tpu.memory_space<vmem>>, %arg2: memref<32x32xbf16, #tpu.memory_space<vmem>>, %arg3: memref<32x512xbf16, #tpu.memory_space<vmem>>, %arg4: memref<32x512xbf16, #tpu.memory_space<vmem>>, %arg5: memref<3x512xf32, #tpu.memory_space<vmem>>, %arg6: memref<512x128xbf16, #tpu.memory_space<vmem>>, %arg7: memref<1x128xf32, #tpu.memory_space<vmem>>, %arg8: memref<32x128xf32, #tpu.memory_space<vmem>>, %arg9: memref<32x512xf32, #tpu.memory_space<vmem>>) attributes {dimension_semantics = [#tpu.dimension_semantics<parallel>], iteration_bounds = array<i64: 2>, scalar_prefetch = 0 : i64, scratch_operands = 0 : i64, tpu.core_type = #tpu.core_type<tc>, window_params = [{transform_indices = @transform_0, window_bounds = array<i64: 32, 32>}, {transform_indices = @transform_1, window_bounds = array<i64: 32, 32>}, {pipeline_mode = #tpu.pipeline_mode<synchronous>, transform_indices = @transform_2, window_bounds = array<i64: 32, 512>}, {pipeline_mode = #tpu.pipeline_mode<synchronous>, transform_indices = @transform_3, window_bounds = array<i64: 32, 512>}, {pipeline_mode = #tpu.pipeline_mode<synchronous>, transform_indices = @transform_4, window_bounds = array<i64: 3, 512>}, {pipeline_mode = #tpu.pipeline_mode<synchronous>, transform_indices = @transform_5, window_bounds = array<i64: 512, 128>}, {pipeline_mode = #tpu.pipeline_mode<synchronous>, transform_indices = @transform_6, window_bounds = array<i64: 1, 128>}, {transform_indices = @transform_7, window_bounds = array<i64: 32, 128>}, {transform_indices = @transform_8, window_bounds = array<i64: 32, 512>}]} {
    %c0 = arith.constant 0 : index
    %c0_0 = arith.constant 0 : index
    %0 = vector.load %arg1[%c0, %c0_0] : memref<32x32xbf16, #tpu.memory_space<vmem>>, vector<32x32xbf16>
    %c0_1 = arith.constant 0 : index
    %c0_2 = arith.constant 0 : index
    %1 = vector.load %arg3[%c0_1, %c0_2] : memref<32x512xbf16, #tpu.memory_space<vmem>>, vector<32x512xbf16>
    %cst = arith.constant dense<0.000000e+00> : vector<32x512xf32>
    %2 = tpu.matmul %0, %1, %cst {dimension_numbers = #tpu.dot_dimension_numbers<[1], [0], [0], [1], [0, 0, 1, 1], [], []>} : vector<32x32xbf16>, vector<32x512xbf16>, vector<32x512xf32> -> vector<32x512xf32>
    %c0_3 = arith.constant 0 : index
    %c0_4 = arith.constant 0 : index
    %3 = vector.load %arg2[%c0_3, %c0_4] : memref<32x32xbf16, #tpu.memory_space<vmem>>, vector<32x32xbf16>
    %c0_5 = arith.constant 0 : index
    %c0_6 = arith.constant 0 : index
    %4 = vector.load %arg4[%c0_5, %c0_6] : memref<32x512xbf16, #tpu.memory_space<vmem>>, vector<32x512xbf16>
    %cst_7 = arith.constant dense<0.000000e+00> : vector<32x512xf32>
    %5 = tpu.matmul %3, %4, %cst_7 {dimension_numbers = #tpu.dot_dimension_numbers<[1], [0], [0], [1], [0, 0, 1, 1], [], []>} : vector<32x32xbf16>, vector<32x512xbf16>, vector<32x512xf32> -> vector<32x512xf32>
    %6 = arith.addf %2, %5 : vector<32x512xf32>
    %c0_8 = arith.constant 0 : index
    %c0_9 = arith.constant 0 : index
    %7 = vector.load %arg5[%c0_8, %c0_9] : memref<3x512xf32, #tpu.memory_space<vmem>>, vector<3x512xf32>
    %8 = vector.extract_strided_slice %7 {offsets = [0, 0], sizes = [1, 512], strides = [1, 1]} : vector<3x512xf32> to vector<1x512xf32>
    %9 = vector.broadcast %8 : vector<1x512xf32> to vector<32x512xf32>
    %10 = arith.addf %6, %9 : vector<32x512xf32>
    %cst_10 = arith.constant 0.000000e+00 : f32
    %11 = vector.broadcast %cst_10 : f32 to vector<32x512xf32>
    %12 = arith.maximumf %10, %11 : vector<32x512xf32>
    %13 = vector.extract_strided_slice %7 {offsets = [1, 0], sizes = [1, 512], strides = [1, 1]} : vector<3x512xf32> to vector<1x512xf32>
    %14 = vector.broadcast %13 : vector<1x512xf32> to vector<32x512xf32>
    %15 = arith.mulf %12, %14 : vector<32x512xf32>
    %16 = vector.extract_strided_slice %7 {offsets = [2, 0], sizes = [1, 512], strides = [1, 1]} : vector<3x512xf32> to vector<1x512xf32>
    %17 = vector.broadcast %16 : vector<1x512xf32> to vector<32x512xf32>
    %18 = arith.addf %15, %17 : vector<32x512xf32>
    %c0_11 = arith.constant 0 : index
    %c0_12 = arith.constant 0 : index
    %19 = vector.load %arg9[%c0_11, %c0_12] : memref<32x512xf32, #tpu.memory_space<vmem>>, vector<32x512xf32>
    tpu.vector_store %arg9[%c0_11, %c0_12], %18 {strides = array<i32>} : memref<32x512xf32, #tpu.memory_space<vmem>>, vector<32x512xf32>,
    %20 = arith.truncf %18 : vector<32x512xf32> to vector<32x512xbf16>
    %c0_13 = arith.constant 0 : index
    %c0_14 = arith.constant 0 : index
    %21 = vector.load %arg6[%c0_13, %c0_14] : memref<512x128xbf16, #tpu.memory_space<vmem>>, vector<512x128xbf16>
    %cst_15 = arith.constant dense<0.000000e+00> : vector<32x128xf32>
    %22 = tpu.matmul %20, %21, %cst_15 {dimension_numbers = #tpu.dot_dimension_numbers<[1], [0], [0], [1], [0, 0, 1, 1], [], []>} : vector<32x512xbf16>, vector<512x128xbf16>, vector<32x128xf32> -> vector<32x128xf32>
    %c0_16 = arith.constant 0 : index
    %c0_17 = arith.constant 0 : index
    %23 = vector.load %arg7[%c0_16, %c0_17] : memref<1x128xf32, #tpu.memory_space<vmem>>, vector<1x128xf32>
    %24 = vector.broadcast %23 : vector<1x128xf32> to vector<32x128xf32>
    %25 = arith.addf %22, %24 : vector<32x128xf32>
    %c0_18 = arith.constant 0 : index
    %c0_19 = arith.constant 0 : index
    %26 = vector.load %arg8[%c0_18, %c0_19] : memref<32x128xf32, #tpu.memory_space<vmem>>, vector<32x128xf32>
    tpu.vector_store %arg8[%c0_18, %c0_19], %25 {strides = array<i32>} : memref<32x128xf32, #tpu.memory_space<vmem>>, vector<32x128xf32>,
    return
  }
  func.func @transform_0(%arg0: i32) -> (i32, i32) {
    %c0_i32 = arith.constant 0 : i32
    %c0_i32_0 = arith.constant 0 : i32
    return %arg0, %c0_i32 : i32, i32
  }
  func.func @transform_1(%arg0: i32) -> (i32, i32) {
    %c0_i32 = arith.constant 0 : i32
    %c0_i32_0 = arith.constant 0 : i32
    return %arg0, %c0_i32 : i32, i32
  }
  func.func @transform_2(%arg0: i32) -> (i32, i32) {
    %c0_i32 = arith.constant 0 : i32
    %c0_i32_0 = arith.constant 0 : i32
    %c0_i32_1 = arith.constant 0 : i32
    return %c0_i32, %c0_i32_0 : i32, i32
  }
  func.func @transform_3(%arg0: i32) -> (i32, i32) {
    %c0_i32 = arith.constant 0 : i32
    %c0_i32_0 = arith.constant 0 : i32
    %c0_i32_1 = arith.constant 0 : i32
    return %c0_i32, %c0_i32_0 : i32, i32
  }
  func.func @transform_4(%arg0: i32) -> (i32, i32) {
    %c0_i32 = arith.constant 0 : i32
    %c0_i32_0 = arith.constant 0 : i32
    %c0_i32_1 = arith.constant 0 : i32
    return %c0_i32, %c0_i32_0 : i32, i32
  }
  func.func @transform_5(%arg0: i32) -> (i32, i32) {
    %c0_i32 = arith.constant 0 : i32
    %c0_i32_0 = arith.constant 0 : i32
    %c0_i32_1 = arith.constant 0 : i32
    return %c0_i32, %c0_i32_0 : i32, i32
  }
  func.func @transform_6(%arg0: i32) -> (i32, i32) {
    %c0_i32 = arith.constant 0 : i32
    %c0_i32_0 = arith.constant 0 : i32
    %c0_i32_1 = arith.constant 0 : i32
    return %c0_i32, %c0_i32_0 : i32, i32
  }
  func.func @transform_7(%arg0: i32) -> (i32, i32) {
    %c0_i32 = arith.constant 0 : i32
    %c0_i32_0 = arith.constant 0 : i32
    return %arg0, %c0_i32 : i32, i32
  }
  func.func @transform_8(%arg0: i32) -> (i32, i32) {
    %c0_i32 = arith.constant 0 : i32
    %c0_i32_0 = arith.constant 0 : i32
    return %arg0, %c0_i32 : i32, i32
  }
}

</mosaic_0001>

<llo_original>
// kernel: tpu_custom_call.1
$region0: #{tpu_custom_call.1}
  #allocation0 [shape = 'u32[]', space=smem, size = 0x4, offset = 0x4, fixed_abs, tag = 'smem constant byte address 0x4 - core index']
  #allocation1 [shape = 'u32[72,128]{1,0:T(1,128)}', space=vmem, size = 0x9000, scoped, tag = 'internal scratch']
  %s0 = inlined_call_operand.vmem [shape: bf16[64,32], index: 0, kind: input, shape index: {}]
  %s1 = inlined_call_operand.vmem [shape: bf16[64,32], index: 1, kind: input, shape index: {}]
  %s2 = inlined_call_operand.vmem [shape: bf16[32,512], index: 2, kind: input, shape index: {}]
  %s3 = inlined_call_operand.hbm [shape: bf16[32,512], index: 3, kind: input, shape index: {}]
  %s4 = inlined_call_operand.vmem [shape: f32[3,512], index: 4, kind: input, shape index: {}]
  %s5 = inlined_call_operand.hbm [shape: bf16[512,128], index: 5, kind: input, shape index: {}]
  %s6 = inlined_call_operand.vmem [shape: f32[1,128], index: 6, kind: input, shape index: {}]
  %s7 = inlined_call_operand.hbm [shape: f32[64,128], index: 7, kind: output, shape index: {0}]
  %s8 = inlined_call_operand.hbm [shape: f32[64,512], index: 8, kind: output, shape index: {1}]
  %9 = xla_tuple %s7, %s8
  %s10 = sld [smem:[#allocation0]]
  $region77: #{tpu_custom_call.1} parent=0
    _
  %s12 = ssub.s32 1, %s10
  %s13 = scalar_select 0, %s12, %s10
  $region1: #{tpu_custom_call.1} parent=0
    #allocation2 [shape = 'u8[32768]{0}', space=vmem, size = 0x8000, scoped, tag = 'input window, operand 3, single buffered']
    #allocation3 [shape = 's32[2]{0}', space=sflag, size = 0x8, scoped, tag = 'scoped memory for tpu_custom_call.1']
    #allocation4 [shape = 's32[2]{0}', space=sflag, size = 0x8, scoped, tag = 'scoped memory for tpu_custom_call.1']
    #allocation5 [shape = 'u8[131072]{0}', space=vmem, size = 0x20000, scoped, tag = 'input window, operand 5, single buffered']
    #allocation6 [shape = 's32[1]{0}', space=sflag, size = 0x4, scoped, tag = 'scoped memory for tpu_custom_call.1']
    #allocation7 [shape = 'u8[32768]{0}', space=vmem, size = 0x8000, scoped, tag = 'output window, operand 0']
    #allocation8 [shape = 'u8[131072]{0}', space=vmem, size = 0x20000, scoped, tag = 'output window, operand 1']
    #allocation9 [shape = 's32[2]{0}', space=sflag, size = 0x8, scoped, tag = 'scoped memory for tpu_custom_call.1']
    %14 = vsyncpa [#allocation3], 0
    %15 = vsyncpa [#allocation6], 0
    %16 = vsyncpa [#allocation4], 0
    %s17 = scalar_lea.sflag [#allocation4], 1
    %18 = vsyncpa %s17, 0
    %19 = vsyncpa [#allocation9], 0
    %s20 = scalar_lea.sflag [#allocation9], 1
    %21 = vsyncpa %s20, 0
    loop: start=0, step=1, limit=4
    $region2: #{tpu_custom_call.1} parent=1 // loop_pre_header
      _
    $region3: #{tpu_custom_call.1} parent=1 // loop_header
      %s23 = sphi 0, %s27
      %p24 = scmp.ge.s32.totalorder %s23, 4
      %s33 = sphi 0, %s35
      %s36 = sphi 0, %s33
      %s37 = sphi 0, %s36
      %s53 = sphi 0, %s37
      %s59 = sphi 0, %s61
      %s62 = sphi 0, %s59
      %s63 = sphi 0, %s62
      %s79 = sphi 0, %s63
      %s83 = sphi 0, %s83
      %s85 = sphi 0, %s83
      %s86 = sphi 0, %s85
      %s100 = sphi 0, %s86
      %s104 = sphi 0, %s104
      %s106 = sphi 0, %s104
      %s107 = sphi 0, %s106
      %s121 = sphi 0, %s107
      %s125 = sphi 0, %s125
      %s127 = sphi 0, %s125
      %s128 = sphi 0, %s127
      %s142 = sphi 0, %s128
      %s146 = sphi 0, %s146
      %s148 = sphi 0, %s146
      %s149 = sphi 0, %s148
      %s163 = sphi 0, %s149
      %s167 = sphi 0, %s167
      %s169 = sphi 0, %s167
      %s170 = sphi 0, %s169
      %s184 = sphi 0, %s170
      %s190 = sphi 0, %s192
      %s193 = sphi 0, %s190
      %s194 = sphi 0, %s193
      %s210 = sphi 0, %s194
      %s216 = sphi 0, %s218
      %s219 = sphi 0, %s216
      %s220 = sphi 0, %s219
      %s236 = sphi 0, %s220
    $region4: #{tpu_custom_call.1} parent=1 // loop_header_branch
      %26 = sbr.rel (%p24) target = $region8
    $region5: #{tpu_custom_call.1} parent=1 // loop_body
      %s28 = ssub.s32 %s23, 1
      %s29 = ssub.s32 %s23, 2
      %s30 = sadd.s32 %s23, 1
      %s31 = ssub.s32 %s23, %s30
      %p32 = scmp.eq.s32.totalorder %s31, 0
      %s34 = sadd.s32 %s33, 1
      %s35 = scalar_select %p32, %s33, %s34
      %p38 = pneg %p32
      %p39 = scmp.eq.s32.totalorder %s23, 1
      %p40 = por %p38, %p39
      %p41 = scmp.ne.s32.totalorder %s33, %s36
      %p42 = scmp.eq.s32.totalorder %s23, 0
      %p43 = por %p41, %p42
      %p44 = scmp.ne.s32.totalorder %s33, %s36
      %p45 = scmp.eq.s32.totalorder %s28, 1
      %p46 = por %p44, %p45
      %p47 = scmp.ne.s32.totalorder %s36, %s37
      %p48 = scmp.eq.s32.totalorder %s28, 0
      %p49 = por %p47, %p48
      %p50 = scmp.ne.s32.totalorder %s36, %s37
      %p51 = scmp.eq.s32.totalorder %s29, 1
      %p52 = por %p50, %p51
      %p54 = scmp.ne.s32.totalorder %s37, %s53
      %p55 = scmp.eq.s32.totalorder %s29, 0
      %p56 = por %p54, %p55
      %s57 = ssub.s32 %s23, %s30
      %p58 = scmp.eq.s32.totalorder %s57, 0
      %s60 = sadd.s32 %s59, 1
      %s61 = scalar_select %p58, %s59, %s60
      %p64 = pneg %p58
      %p65 = scmp.eq.s32.totalorder %s23, 1
      %p66 = por %p64, %p65
      %p67 = scmp.ne.s32.totalorder %s59, %s62
      %p68 = scmp.eq.s32.totalorder %s23, 0
      %p69 = por %p67, %p68
      %p70 = scmp.ne.s32.totalorder %s59, %s62
      %p71 = scmp.eq.s32.totalorder %s28, 1
      %p72 = por %p70, %p71
      %p73 = scmp.ne.s32.totalorder %s62, %s63
      %p74 = scmp.eq.s32.totalorder %s28, 0
      %p75 = por %p73, %p74
      %p76 = scmp.ne.s32.totalorder %s62, %s63
      %p77 = scmp.eq.s32.totalorder %s29, 1
      %p78 = por %p76, %p77
      %p80 = scmp.ne.s32.totalorder %s63, %s79
      %p81 = scmp.eq.s32.totalorder %s29, 0
      %p82 = por %p80, %p81
      %s84 = sadd.s32 %s83, 1
      %p87 = scmp.eq.s32.totalorder %s23, 1
      %p88 = scmp.ne.s32.totalorder %s83, %s85
      %p89 = scmp.eq.s32.totalorder %s23, 0
      %p90 = por %p88, %p89
      %p91 = scmp.ne.s32.totalorder %s83, %s85
      %p92 = scmp.eq.s32.totalorder %s28, 1
      %p93 = por %p91, %p92
      %p94 = scmp.ne.s32.totalorder %s85, %s86
      %p95 = scmp.eq.s32.totalorder %s28, 0
      %p96 = por %p94, %p95
      %p97 = scmp.ne.s32.totalorder %s85, %s86
      %p98 = scmp.eq.s32.totalorder %s29, 1
      %p99 = por %p97, %p98
      %p101 = scmp.ne.s32.totalorder %s86, %s100
      %p102 = scmp.eq.s32.totalorder %s29, 0
      %p103 = por %p101, %p102
      %s105 = sadd.s32 %s104, 1
      %p108 = scmp.eq.s32.totalorder %s23, 1
      %p109 = scmp.ne.s32.totalorder %s104, %s106
      %p110 = scmp.eq.s32.totalorder %s23, 0
      %p111 = por %p109, %p110
      %p112 = scmp.ne.s32.totalorder %s104, %s106
      %p113 = scmp.eq.s32.totalorder %s28, 1
      %p114 = por %p112, %p113
      %p115 = scmp.ne.s32.totalorder %s106, %s107
      %p116 = scmp.eq.s32.totalorder %s28, 0
      %p117 = por %p115, %p116
      %p118 = scmp.ne.s32.totalorder %s106, %s107
      %p119 = scmp.eq.s32.totalorder %s29, 1
      %p120 = por %p118, %p119
      %p122 = scmp.ne.s32.totalorder %s107, %s121
      %p123 = scmp.eq.s32.totalorder %s29, 0
      %p124 = por %p122, %p123
      %s126 = sadd.s32 %s125, 1
      %p129 = scmp.eq.s32.totalorder %s23, 1
      %p130 = scmp.ne.s32.totalorder %s125, %s127
      %p131 = scmp.eq.s32.totalorder %s23, 0
      %p132 = por %p130, %p131
      %p133 = scmp.ne.s32.totalorder %s125, %s127
      %p134 = scmp.eq.s32.totalorder %s28, 1
      %p135 = por %p133, %p134
      %p136 = scmp.ne.s32.totalorder %s127, %s128
      %p137 = scmp.eq.s32.totalorder %s28, 0
      %p138 = por %p136, %p137
      %p139 = scmp.ne.s32.totalorder %s127, %s128
      %p140 = scmp.eq.s32.totalorder %s29, 1
      %p141 = por %p139, %p140
      %p143 = scmp.ne.s32.totalorder %s128, %s142
      %p144 = scmp.eq.s32.totalorder %s29, 0
      %p145 = por %p143, %p144
      %s147 = sadd.s32 %s146, 1
      %p150 = scmp.eq.s32.totalorder %s23, 1
      %p151 = scmp.ne.s32.totalorder %s146, %s148
      %p152 = scmp.eq.s32.totalorder %s23, 0
      %p153 = por %p151, %p152
      %p154 = scmp.ne.s32.totalorder %s146, %s148
      %p155 = scmp.eq.s32.totalorder %s28, 1
      %p156 = por %p154, %p155
      %p157 = scmp.ne.s32.totalorder %s148, %s149
      %p158 = scmp.eq.s32.totalorder %s28, 0
      %p159 = por %p157, %p158
      %p160 = scmp.ne.s32.totalorder %s148, %s149
      %p161 = scmp.eq.s32.totalorder %s29, 1
      %p162 = por %p160, %p161
      %p164 = scmp.ne.s32.totalorder %s149, %s163
      %p165 = scmp.eq.s32.totalorder %s29, 0
      %p166 = por %p164, %p165
      %s168 = sadd.s32 %s167, 1
      %p171 = scmp.eq.s32.totalorder %s23, 1
      %p172 = scmp.ne.s32.totalorder %s167, %s169
      %p173 = scmp.eq.s32.totalorder %s23, 0
      %p174 = por %p172, %p173
      %p175 = scmp.ne.s32.totalorder %s167, %s169
      %p176 = scmp.eq.s32.totalorder %s28, 1
      %p177 = por %p175, %p176
      %p178 = scmp.ne.s32.totalorder %s169, %s170
      %p179 = scmp.eq.s32.totalorder %s28, 0
      %p180 = por %p178, %p179
      %p181 = scmp.ne.s32.totalorder %s169, %s170
      %p182 = scmp.eq.s32.totalorder %s29, 1
      %p183 = por %p181, %p182
      %p185 = scmp.ne.s32.totalorder %s170, %s184
      %p186 = scmp.eq.s32.totalorder %s29, 0
      %p187 = por %p185, %p186
      %s188 = ssub.s32 %s23, %s30
      %p189 = scmp.eq.s32.totalorder %s188, 0
      %s191 = sadd.s32 %s190, 1
      %s192 = scalar_select %p189, %s190, %s191
      %p195 = pneg %p189
      %p196 = scmp.eq.s32.totalorder %s23, 1
      %p197 = por %p195, %p196
      %p198 = scmp.ne.s32.totalorder %s190, %s193
      %p199 = scmp.eq.s32.totalorder %s23, 0
      %p200 = por %p198, %p199
      %p201 = scmp.ne.s32.totalorder %s190, %s193
      %p202 = scmp.eq.s32.totalorder %s28, 1
      %p203 = por %p201, %p202
      %p204 = scmp.ne.s32.totalorder %s193, %s194
      %p205 = scmp.eq.s32.totalorder %s28, 0
      %p206 = por %p204, %p205
      %p207 = scmp.ne.s32.totalorder %s193, %s194
      %p208 = scmp.eq.s32.totalorder %s29, 1
      %p209 = por %p207, %p208
      %p211 = scmp.ne.s32.totalorder %s194, %s210
      %p212 = scmp.eq.s32.totalorder %s29, 0
      %p213 = por %p211, %p212
      %s214 = ssub.s32 %s23, %s30
      %p215 = scmp.eq.s32.totalorder %s214, 0
      %s217 = sadd.s32 %s216, 1
      %s218 = scalar_select %p215, %s216, %s217
      %p221 = pneg %p215
      %p222 = scmp.eq.s32.totalorder %s23, 1
      %p223 = por %p221, %p222
      %p224 = scmp.ne.s32.totalorder %s216, %s219
      %p225 = scmp.eq.s32.totalorder %s23, 0
      %p226 = por %p224, %p225
      %p227 = scmp.ne.s32.totalorder %s216, %s219
      %p228 = scmp.eq.s32.totalorder %s28, 1
      %p229 = por %p227, %p228
      %p230 = scmp.ne.s32.totalorder %s219, %s220
      %p231 = scmp.eq.s32.totalorder %s28, 0
      %p232 = por %p230, %p231
      %p233 = scmp.ne.s32.totalorder %s219, %s220
      %p234 = scmp.eq.s32.totalorder %s29, 1
      %p235 = por %p233, %p234
      %p237 = scmp.ne.s32.totalorder %s220, %s236
      %p238 = scmp.eq.s32.totalorder %s29, 0
      %p239 = por %p237, %p238
      %p240 = scmp.le.s32.totalorder 1, %s23
      %p241 = scmp.lt.s32.totalorder %s23, 3
      %p242 = pnand %p240, %p241
      %p243 = pneg %p242
      // Predicated region
      $region9: #{tpu_custom_call.1} parent=5 // pred_check
        _
      $region10: #{tpu_custom_call.1} parent=5 // pred_check_branch
        %245 = sbr.rel (%p242) target = $region12
      $region11: #{tpu_custom_call.1} parent=5 // pred_region
        %s246 = ssub.s32 %s23, 1
        // Predicated region
        $region13: #{tpu_custom_call.1} parent=11 // pred_check
          %p247 = pneg %p96
        $region14: #{tpu_custom_call.1} parent=11 // pred_check_branch
          %249 = sbr.rel (%p247) target = $region16
        $region15: #{tpu_custom_call.1} parent=11 // pred_region
          _
        $region16: #{tpu_custom_call.1} parent=11 // pred_fallthru
          _
        // Predicated region
        $region17: #{tpu_custom_call.1} parent=11 // pred_check
          %p250 = pneg %p117
        $region18: #{tpu_custom_call.1} parent=11 // pred_check_branch
          %252 = sbr.rel (%p250) target = $region20
        $region19: #{tpu_custom_call.1} parent=11 // pred_region
          %254 = vsyncadd [#allocation3], 0
          %s255 = sshll.u32 %s3, 4
          %s256 = int_to_ptr.hbm [resolvable:$true] %s255
          %s257 = sshll.u32 [#allocation2], 4
          %s258 = int_to_ptr.vmem [resolvable:$true] %s257
          %263 = dma.hbm_to_vmem [thread:$0]  %s256, 1024, %s258, [#allocation3], 256, 256, 16
        $region20: #{tpu_custom_call.1} parent=11 // pred_fallthru
          _
        // Predicated region
        $region21: #{tpu_custom_call.1} parent=11 // pred_check
          %p264 = pneg %p138
        $region22: #{tpu_custom_call.1} parent=11 // pred_check_branch
          %266 = sbr.rel (%p264) target = $region24
        $region23: #{tpu_custom_call.1} parent=11 // pred_region
          _
        $region24: #{tpu_custom_call.1} parent=11 // pred_fallthru
          _
        // Predicated region
        $region25: #{tpu_custom_call.1} parent=11 // pred_check
          %p267 = pneg %p159
        $region26: #{tpu_custom_call.1} parent=11 // pred_check_branch
          %269 = sbr.rel (%p267) target = $region28
        $region27: #{tpu_custom_call.1} parent=11 // pred_region
          %271 = vsyncadd [#allocation6], 0
          %s272 = sshll.u32 %s5, 4
          %s273 = int_to_ptr.hbm [resolvable:$true] %s272
          %s274 = sshll.u32 [#allocation5], 4
          %s275 = int_to_ptr.vmem [resolvable:$true] %s274
          %280 = dma.hbm_to_vmem [thread:$0]  %s273, 4096, %s275, [#allocation6], 64, 64, 4
        $region28: #{tpu_custom_call.1} parent=11 // pred_fallthru
          _
        // Predicated region
        $region29: #{tpu_custom_call.1} parent=11 // pred_check
          %p281 = pneg %p180
        $region30: #{tpu_custom_call.1} parent=11 // pred_check_branch
          %283 = sbr.rel (%p281) target = $region32
        $region31: #{tpu_custom_call.1} parent=11 // pred_region
          _
        $region32: #{tpu_custom_call.1} parent=11 // pred_fallthru
          _
      $region12: #{tpu_custom_call.1} parent=5 // pred_fallthru
        _
      %p284 = scmp.lt.s32.totalorder %s23, 2
      // Predicated region
      $region33: #{tpu_custom_call.1} parent=5 // pred_check
        %p285 = pneg %p284
      $region34: #{tpu_custom_call.1} parent=5 // pred_check_branch
        %287 = sbr.rel (%p285) target = $region36
      $region35: #{tpu_custom_call.1} parent=5 // pred_region
        // Predicated region
        $region37: #{tpu_custom_call.1} parent=35 // pred_check
          %p288 = pneg %p43
        $region38: #{tpu_custom_call.1} parent=35 // pred_check_branch
          %290 = sbr.rel (%p288) target = $region40
        $region39: #{tpu_custom_call.1} parent=35 // pred_region
          %s291 = smul.u32 4, %s23
          %p292 = scmp.lt.s32.totalorder %s291, 7
          %s293 = scalar_select %p292, %s291, 7
          %s294 = smul.addr %s293, 4
          %s295 = scalar_lea.vmem %s0, %s294
          %s296 = smul.u32 4, %s23
        $region40: #{tpu_custom_call.1} parent=35 // pred_fallthru
          _
        // Predicated region
        $region41: #{tpu_custom_call.1} parent=35 // pred_check
          %p297 = pneg %p69
        $region42: #{tpu_custom_call.1} parent=35 // pred_check_branch
          %299 = sbr.rel (%p297) target = $region44
        $region43: #{tpu_custom_call.1} parent=35 // pred_region
          %s300 = smul.u32 4, %s23
          %p301 = scmp.lt.s32.totalorder %s300, 7
          %s302 = scalar_select %p301, %s300, 7
          %s303 = smul.addr %s302, 4
          %s304 = scalar_lea.vmem %s1, %s303
          %s305 = smul.u32 4, %s23
        $region44: #{tpu_custom_call.1} parent=35 // pred_fallthru
          _
      $region36: #{tpu_custom_call.1} parent=5 // pred_fallthru
        _
      %p306 = scmp.le.s32.totalorder 1, %s23
      %p307 = scmp.lt.s32.totalorder %s23, 3
      %p308 = pnand %p306, %p307
      %p309 = pneg %p308
      // Predicated region
      $region45: #{tpu_custom_call.1} parent=5 // pred_check
        _
      $region46: #{tpu_custom_call.1} parent=5 // pred_check_branch
        %311 = sbr.rel (%p308) target = $region48
      $region47: #{tpu_custom_call.1} parent=5 // pred_region
        %s312 = ssub.s32 %s23, 1
        // Predicated region
        $region49: #{tpu_custom_call.1} parent=47 // pred_check
          %p313 = pneg %p117
        $region50: #{tpu_custom_call.1} parent=47 // pred_check_branch
          %315 = sbr.rel (%p313) target = $region52
        $region51: #{tpu_custom_call.1} parent=47 // pred_region
          %317 = dma.done [#allocation3], 1024
        $region52: #{tpu_custom_call.1} parent=47 // pred_fallthru
          _
        // Predicated region
        $region53: #{tpu_custom_call.1} parent=47 // pred_check
          %p318 = pneg %p159
        $region54: #{tpu_custom_call.1} parent=47 // pred_check_branch
          %320 = sbr.rel (%p318) target = $region56
        $region55: #{tpu_custom_call.1} parent=47 // pred_region
          %322 = dma.done [#allocation6], 4096
        $region56: #{tpu_custom_call.1} parent=47 // pred_fallthru
          _
        %s323 = smul.u32 4, %s28
        %p324 = scmp.lt.s32.totalorder %s323, 7
        %s325 = scalar_select %p324, %s323, 7
        %s326 = smul.addr %s325, 4
        %s327 = scalar_lea.vmem %s0, %s326
        %p328 = pneg %p49
        %p329 = pneg %p46
        %s330 = smul.u32 4, %s28
        %p331 = scmp.lt.s32.totalorder %s330, 7
        %s332 = scalar_select %p331, %s330, 7
        %s333 = smul.addr %s332, 4
        %s334 = scalar_lea.vmem %s1, %s333
        %p335 = pneg %p75
        %p336 = pneg %p72
        %p337 = pneg %p96
        %p338 = pneg %p93
        %p339 = pneg %p117
        %p340 = pneg %p114
        %p341 = pneg %p138
        %p342 = pneg %p135
        %p343 = pneg %p159
        %p344 = pneg %p156
        %p345 = pneg %p180
        %p346 = pneg %p177
        %p347 = pneg %p206
        %p348 = pneg %p203
        %s349 = sand.u32 %s193, 1
        %s350 = scalar_lea.sflag [#allocation4], %s349
        %s351 = sand.u32 %s193, 1
        %s352 = smul.addr %s351, 32
        %s353 = scalar_lea.vmem [#allocation7], %s352
        %p354 = pneg %p232
        %p355 = pneg %p229
        %s356 = sand.u32 %s219, 1
        %s357 = scalar_lea.sflag [#allocation9], %s356
        %s358 = sand.u32 %s219, 1
        %s359 = smul.addr %s358, 128
        %s360 = scalar_lea.vmem [#allocation8], %s359
        %s361 = smul.u32 4, %s28
        %p362 = scmp.lt.s32.totalorder %s361, 7
        %s363 = scalar_select %p362, %s361, 7
        %s364 = smul.addr %s363, 4
        %s365 = scalar_lea.vmem %s0, %s364
        %s366 = smul.u32 4, %s28
        %s367 = smul.u32 4, %s28
        %p368 = scmp.lt.s32.totalorder %s367, 7
        %s369 = scalar_select %p368, %s367, 7
        %s370 = smul.addr %s369, 4
        %s371 = scalar_lea.vmem %s1, %s370
        %s372 = smul.u32 4, %s28
        %s373 = smul.u32 4, %s28
        %s374 = smul.u32 4, %s28
        %v376 = vld [vmem:[%s365] sm:$0xf]
        %v377 = vld [vmem:[%s365 + $0x4] sm:$0xf]
        %v378 = vld [vmem:[%s365 + $0x8] sm:$0xf]
        %v379 = vld [vmem:[%s365 + $0xc] sm:$0xf]
        %v380 = vld [vmem:[%s2] sm:$0xff]
        %v381 = vld [vmem:[%s2 + $0x8] sm:$0xff]
        %v382 = vld [vmem:[%s2 + $0x10] sm:$0xff]
        %v383 = vld [vmem:[%s2 + $0x18] sm:$0xff]
        %v384 = vld [vmem:[%s2 + $0x20] sm:$0xff]
        %v385 = vld [vmem:[%s2 + $0x28] sm:$0xff]
        %v386 = vld [vmem:[%s2 + $0x30] sm:$0xff]
        %v387 = vld [vmem:[%s2 + $0x38] sm:$0xff]
        %v388 = vld [vmem:[%s371] sm:$0xf]
        %v389 = vld [vmem:[%s371 + $0x4] sm:$0xf]
        %v390 = vld [vmem:[%s371 + $0x8] sm:$0xf]
        %v391 = vld [vmem:[%s371 + $0xc] sm:$0xf]
        %v392 = vld [vmem:[#allocation2] sm:$0xff]
        %v393 = vld [vmem:[#allocation2 + $0x8] sm:$0xff]
        %v394 = vld [vmem:[#allocation2 + $0x10] sm:$0xff]
        %v395 = vld [vmem:[#allocation2 + $0x18] sm:$0xff]
        %v396 = vld [vmem:[#allocation2 + $0x20] sm:$0xff]
        %v397 = vld [vmem:[#allocation2 + $0x28] sm:$0xff]
        %v398 = vld [vmem:[#allocation2 + $0x30] sm:$0xff]
        %v399 = vld [vmem:[#allocation2 + $0x38] sm:$0xff]
        %v404 = vunpack.c.l.b16 %v388
        %v405 = vunpack.c.l.b16 %v389
        %v406 = vunpack.c.l.b16 %v390
        %v407 = vunpack.c.l.b16 %v391
        %v408 = vpack.c.b16 %v405, %v404
        %v409 = vpack.c.b16 %v407, %v406
        %v418 = vunpack.c.l.b16 %v392
        %v419 = vunpack.c.h.b16 %v392
        %v420 = vunpack.c.l.b16 %v393
        %v421 = vunpack.c.h.b16 %v393
        %v422 = vunpack.c.l.b16 %v394
        %v423 = vunpack.c.h.b16 %v394
        %v424 = vunpack.c.l.b16 %v395
        %v425 = vunpack.c.h.b16 %v395
        %v426 = vunpack.c.l.b16 %v396
        %v427 = vunpack.c.h.b16 %v396
        %v428 = vunpack.c.l.b16 %v397
        %v429 = vunpack.c.h.b16 %v397
        %v430 = vunpack.c.l.b16 %v398
        %v431 = vunpack.c.h.b16 %v398
        %v432 = vunpack.c.l.b16 %v399
        %v433 = vunpack.c.h.b16 %v399
        %v434 = vpack.c.b16 %v422, %v418
        %v435 = vpack.c.b16 %v423, %v419
        %v436 = vpack.c.b16 %v424, %v420
        %v437 = vpack.c.b16 %v425, %v421
        %v438 = vpack.c.b16 %v430, %v426
        %v439 = vpack.c.b16 %v431, %v427
        %v440 = vpack.c.b16 %v432, %v428
        %v441 = vpack.c.b16 %v433, %v429
        %vm450 = vcmask 261120
        %v452 = vsel %vm450, %v408, 0
        %v455 = vsel %vm450, %v409, 0
        %457 = vmatpush.bf16.msra.mxu0 0
        %458 = vmatpush.bf16.msra.mxu0 0
        %459 = vmatpush.bf16.msra.mxu0 0
        %460 = vmatpush.bf16.msra.mxu0 0
        %461 = vmatpush.bf16.msra.mxu0 0
        %462 = vmatpush.bf16.msra.mxu0 0
        %463 = vmatpush.bf16.msra.mxu0 %v438
        %464 = vmatpush.bf16.msra.mxu0 %v434
        %465 = vmatmul.bf16.gmra.mxu0 %v452
        %v466 = vpop.f32.mrf.mxu0
        %v467 = vadd.f32 0.0, %v466
        %v468 = vpop.f32.mrf.mxu0
        %v469 = vadd.f32 0.0, %v468
        %470 = vmatmul.bf16.gmra.mxu0 %v455
        %v471 = vpop.f32.mrf.mxu0
        %v472 = vadd.f32 0.0, %v471
        %v473 = vpop.f32.mrf.mxu0
        %v474 = vadd.f32 0.0, %v473
        %475 = vdwg.mxu0
        %476 = vmatpush.bf16.msra.mxu0 0
        %477 = vmatpush.bf16.msra.mxu0 0
        %478 = vmatpush.bf16.msra.mxu0 0
        %479 = vmatpush.bf16.msra.mxu0 0
        %480 = vmatpush.bf16.msra.mxu0 0
        %481 = vmatpush.bf16.msra.mxu0 0
        %482 = vmatpush.bf16.msra.mxu0 %v439
        %483 = vmatpush.bf16.msra.mxu0 %v435
        %484 = vmatmul.bf16.gmra.mxu0 %v452
        %v485 = vpop.f32.mrf.mxu0
        %v486 = vadd.f32 0.0, %v485
        %v487 = vpop.f32.mrf.mxu0
        %v488 = vadd.f32 0.0, %v487
        %489 = vmatmul.bf16.gmra.mxu0 %v455
        %v490 = vpop.f32.mrf.mxu0
        %v491 = vadd.f32 0.0, %v490
        %v492 = vpop.f32.mrf.mxu0
        %v493 = vadd.f32 0.0, %v492
        %494 = vdwg.mxu0
        %495 = vmatpush.bf16.msra.mxu0 0
        %496 = vmatpush.bf16.msra.mxu0 0
        %497 = vmatpush.bf16.msra.mxu0 0
        %498 = vmatpush.bf16.msra.mxu0 0
        %499 = vmatpush.bf16.msra.mxu0 0
        %500 = vmatpush.bf16.msra.mxu0 0
        %501 = vmatpush.bf16.msra.mxu0 %v440
        %502 = vmatpush.bf16.msra.mxu0 %v436
        %503 = vmatmul.bf16.gmra.mxu0 %v452
        %v504 = vpop.f32.mrf.mxu0
        %v505 = vadd.f32 0.0, %v504
        %v506 = vpop.f32.mrf.mxu0
        %v507 = vadd.f32 0.0, %v506
        %508 = vmatmul.bf16.gmra.mxu0 %v455
        %v509 = vpop.f32.mrf.mxu0
        %v510 = vadd.f32 0.0, %v509
        %v511 = vpop.f32.mrf.mxu0
        %v512 = vadd.f32 0.0, %v511
        %513 = vdwg.mxu0
        %514 = vmatpush.bf16.msra.mxu0 0
        %515 = vmatpush.bf16.msra.mxu0 0
        %516 = vmatpush.bf16.msra.mxu0 0
        %517 = vmatpush.bf16.msra.mxu0 0
        %518 = vmatpush.bf16.msra.mxu0 0
        %519 = vmatpush.bf16.msra.mxu0 0
        %520 = vmatpush.bf16.msra.mxu0 %v441
        %521 = vmatpush.bf16.msra.mxu0 %v437
        %522 = vmatmul.bf16.gmra.mxu0 %v452
        %v523 = vpop.f32.mrf.mxu0
        %v524 = vadd.f32 0.0, %v523
        %v525 = vpop.f32.mrf.mxu0
        %v526 = vadd.f32 0.0, %v525
        %527 = vmatmul.bf16.gmra.mxu0 %v455
        %v528 = vpop.f32.mrf.mxu0
        %v529 = vadd.f32 0.0, %v528
        %v530 = vpop.f32.mrf.mxu0
        %v531 = vadd.f32 0.0, %v530
        %532 = vdwg.mxu0
        %v537 = vunpack.c.l.b16 %v376
        %v538 = vunpack.c.l.b16 %v377
        %v539 = vunpack.c.l.b16 %v378
        %v540 = vunpack.c.l.b16 %v379
        %v541 = vpack.c.b16 %v538, %v537
        %v542 = vpack.c.b16 %v540, %v539
        %v551 = vunpack.c.l.b16 %v380
        %v552 = vunpack.c.h.b16 %v380
        %v553 = vunpack.c.l.b16 %v381
        %v554 = vunpack.c.h.b16 %v381
        %v555 = vunpack.c.l.b16 %v382
        %v556 = vunpack.c.h.b16 %v382
        %v557 = vunpack.c.l.b16 %v383
        %v558 = vunpack.c.h.b16 %v383
        %v559 = vunpack.c.l.b16 %v384
        %v560 = vunpack.c.h.b16 %v384
        %v561 = vunpack.c.l.b16 %v385
        %v562 = vunpack.c.h.b16 %v385
        %v563 = vunpack.c.l.b16 %v386
        %v564 = vunpack.c.h.b16 %v386
        %v565 = vunpack.c.l.b16 %v387
        %v566 = vunpack.c.h.b16 %v387
        %v567 = vpack.c.b16 %v555, %v551
        %v568 = vpack.c.b16 %v556, %v552
        %v569 = vpack.c.b16 %v557, %v553
        %v570 = vpack.c.b16 %v558, %v554
        %v571 = vpack.c.b16 %v563, %v559
        %v572 = vpack.c.b16 %v564, %v560
        %v573 = vpack.c.b16 %v565, %v561
        %v574 = vpack.c.b16 %v566, %v562
        %v584 = vsel %vm450, %v541, 0
        %v587 = vsel %vm450, %v542, 0
        %589 = vmatpush.bf16.msra.mxu0 0
        %590 = vmatpush.bf16.msra.mxu0 0
        %591 = vmatpush.bf16.msra.mxu0 0
        %592 = vmatpush.bf16.msra.mxu0 0
        %593 = vmatpush.bf16.msra.mxu0 0
        %594 = vmatpush.bf16.msra.mxu0 0
        %595 = vmatpush.bf16.msra.mxu0 %v571
        %596 = vmatpush.bf16.msra.mxu0 %v567
        %597 = vmatmul.bf16.gmra.mxu0 %v584
        %v598 = vpop.f32.mrf.mxu0
        %v599 = vadd.f32 %v467, %v598
        %v600 = vpop.f32.mrf.mxu0
        %v601 = vadd.f32 %v469, %v600
        %602 = vmatmul.bf16.gmra.mxu0 %v587
        %v603 = vpop.f32.mrf.mxu0
        %v604 = vadd.f32 %v472, %v603
        %v605 = vpop.f32.mrf.mxu0
        %v606 = vadd.f32 %v474, %v605
        %607 = vdwg.mxu0
        %608 = vmatpush.bf16.msra.mxu0 0
        %609 = vmatpush.bf16.msra.mxu0 0
        %610 = vmatpush.bf16.msra.mxu0 0
        %611 = vmatpush.bf16.msra.mxu0 0
        %612 = vmatpush.bf16.msra.mxu0 0
        %613 = vmatpush.bf16.msra.mxu0 0
        %614 = vmatpush.bf16.msra.mxu0 %v572
        %615 = vmatpush.bf16.msra.mxu0 %v568
        %616 = vmatmul.bf16.gmra.mxu0 %v584
        %v617 = vpop.f32.mrf.mxu0
        %v618 = vadd.f32 %v486, %v617
        %v619 = vpop.f32.mrf.mxu0
        %v620 = vadd.f32 %v488, %v619
        %621 = vmatmul.bf16.gmra.mxu0 %v587
        %v622 = vpop.f32.mrf.mxu0
        %v623 = vadd.f32 %v491, %v622
        %v624 = vpop.f32.mrf.mxu0
        %v625 = vadd.f32 %v493, %v624
        %626 = vdwg.mxu0
        %627 = vmatpush.bf16.msra.mxu0 0
        %628 = vmatpush.bf16.msra.mxu0 0
        %629 = vmatpush.bf16.msra.mxu0 0
        %630 = vmatpush.bf16.msra.mxu0 0
        %631 = vmatpush.bf16.msra.mxu0 0
        %632 = vmatpush.bf16.msra.mxu0 0
        %633 = vmatpush.bf16.msra.mxu0 %v573
        %634 = vmatpush.bf16.msra.mxu0 %v569
        %635 = vmatmul.bf16.gmra.mxu0 %v584
        %v636 = vpop.f32.mrf.mxu0
        %v637 = vadd.f32 %v505, %v636
        %v638 = vpop.f32.mrf.mxu0
        %v639 = vadd.f32 %v507, %v638
        %640 = vmatmul.bf16.gmra.mxu0 %v587
        %v641 = vpop.f32.mrf.mxu0
        %v642 = vadd.f32 %v510, %v641
        %v643 = vpop.f32.mrf.mxu0
        %v644 = vadd.f32 %v512, %v643
        %645 = vdwg.mxu0
        %646 = vmatpush.bf16.msra.mxu0 0
        %647 = vmatpush.bf16.msra.mxu0 0
        %648 = vmatpush.bf16.msra.mxu0 0
        %649 = vmatpush.bf16.msra.mxu0 0
        %650 = vmatpush.bf16.msra.mxu0 0
        %651 = vmatpush.bf16.msra.mxu0 0
        %652 = vmatpush.bf16.msra.mxu0 %v574
        %653 = vmatpush.bf16.msra.mxu0 %v570
        %654 = vmatmul.bf16.gmra.mxu0 %v584
        %v655 = vpop.f32.mrf.mxu0
        %v656 = vadd.f32 %v524, %v655
        %v657 = vpop.f32.mrf.mxu0
        %v658 = vadd.f32 %v526, %v657
        %659 = vmatmul.bf16.gmra.mxu0 %v587
        %v660 = vpop.f32.mrf.mxu0
        %v661 = vadd.f32 %v529, %v660
        %v662 = vpop.f32.mrf.mxu0
        %v663 = vadd.f32 %v531, %v662
        %664 = vdwg.mxu0
        %v665 = vld [vmem:[%s4] sm:$0x77]
        %v666 = vld [vmem:[%s4 + $0x8] sm:$0x77]
        %v669 = vperm.slane %v665, 0
        %v670 = vperm.slane %v665, 4
        %v671 = vperm.slane %v666, 0
        %v672 = vperm.slane %v666, 4
        %v677 = vperm.slane %v669, 0
        %v678 = vperm.slane %v670, 0
        %v679 = vperm.slane %v671, 0
        %v680 = vperm.slane %v672, 0
        %v681 = vadd.f32 %v599, %v677
        %v682 = vadd.f32 %v618, %v678
        %v683 = vadd.f32 %v637, %v679
        %v684 = vadd.f32 %v656, %v680
        %v685 = vadd.f32 %v601, %v677
        %v686 = vadd.f32 %v620, %v678
        %v687 = vadd.f32 %v639, %v679
        %v688 = vadd.f32 %v658, %v680
        %v689 = vadd.f32 %v604, %v677
        %v690 = vadd.f32 %v623, %v678
        %v691 = vadd.f32 %v642, %v679
        %v692 = vadd.f32 %v661, %v680
        %v693 = vadd.f32 %v606, %v677
        %v694 = vadd.f32 %v625, %v678
        %v695 = vadd.f32 %v644, %v679
        %v696 = vadd.f32 %v663, %v680
        %v697 = vmax.f32 %v681, 0.0
        %v698 = vmax.f32 %v682, 0.0
        %v699 = vmax.f32 %v683, 0.0
        %v700 = vmax.f32 %v684, 0.0
        %v701 = vmax.f32 %v685, 0.0
        %v702 = vmax.f32 %v686, 0.0
        %v703 = vmax.f32 %v687, 0.0
        %v704 = vmax.f32 %v688, 0.0
        %v705 = vmax.f32 %v689, 0.0
        %v706 = vmax.f32 %v690, 0.0
        %v707 = vmax.f32 %v691, 0.0
        %v708 = vmax.f32 %v692, 0.0
        %v709 = vmax.f32 %v693, 0.0
        %v710 = vmax.f32 %v694, 0.0
        %v711 = vmax.f32 %v695, 0.0
        %v712 = vmax.f32 %v696, 0.0
        %v713 = vperm.slane %v665, 1
        %v714 = vperm.slane %v665, 5
        %v715 = vperm.slane %v666, 1
        %v716 = vperm.slane %v666, 5
        %v721 = vperm.slane %v713, 1
        %v722 = vperm.slane %v714, 1
        %v723 = vperm.slane %v715, 1
        %v724 = vperm.slane %v716, 1
        %v725 = vmul.f32 %v697, %v721
        %v726 = vmul.f32 %v698, %v722
        %v727 = vmul.f32 %v699, %v723
        %v728 = vmul.f32 %v700, %v724
        %v729 = vmul.f32 %v701, %v721
        %v730 = vmul.f32 %v702, %v722
        %v731 = vmul.f32 %v703, %v723
        %v732 = vmul.f32 %v704, %v724
        %v733 = vmul.f32 %v705, %v721
        %v734 = vmul.f32 %v706, %v722
        %v735 = vmul.f32 %v707, %v723
        %v736 = vmul.f32 %v708, %v724
        %v737 = vmul.f32 %v709, %v721
        %v738 = vmul.f32 %v710, %v722
        %v739 = vmul.f32 %v711, %v723
        %v740 = vmul.f32 %v712, %v724
        %v741 = vperm.slane %v665, 2
        %v742 = vperm.slane %v665, 6
        %v743 = vperm.slane %v666, 2
        %v744 = vperm.slane %v666, 6
        %v749 = vperm.slane %v741, 2
        %v750 = vperm.slane %v742, 2
        %v751 = vperm.slane %v743, 2
        %v752 = vperm.slane %v744, 2
        %v753 = vadd.f32 %v725, %v749
        %v754 = vadd.f32 %v726, %v750
        %v755 = vadd.f32 %v727, %v751
        %v756 = vadd.f32 %v728, %v752
        %v757 = vadd.f32 %v729, %v749
        %v758 = vadd.f32 %v730, %v750
        %v759 = vadd.f32 %v731, %v751
        %v760 = vadd.f32 %v732, %v752
        %v761 = vadd.f32 %v733, %v749
        %v762 = vadd.f32 %v734, %v750
        %v763 = vadd.f32 %v735, %v751
        %v764 = vadd.f32 %v736, %v752
        %v765 = vadd.f32 %v737, %v749
        %v766 = vadd.f32 %v738, %v750
        %v767 = vadd.f32 %v739, %v751
        %v768 = vadd.f32 %v740, %v752
        %769 = vst [vmem:[%s360] sm:$0xff] %v753
        %770 = vst [vmem:[%s360 + $0x8] sm:$0xff] %v754
        %771 = vst [vmem:[%s360 + $0x10] sm:$0xff] %v755
        %772 = vst [vmem:[%s360 + $0x18] sm:$0xff] %v756
        %773 = vst [vmem:[%s360 + $0x20] sm:$0xff] %v757
        %774 = vst [vmem:[%s360 + $0x28] sm:$0xff] %v758
        %775 = vst [vmem:[%s360 + $0x30] sm:$0xff] %v759
        %776 = vst [vmem:[%s360 + $0x38] sm:$0xff] %v760
        %777 = vst [vmem:[%s360 + $0x40] sm:$0xff] %v761
        %778 = vst [vmem:[%s360 + $0x48] sm:$0xff] %v762
        %779 = vst [vmem:[%s360 + $0x50] sm:$0xff] %v763
        %780 = vst [vmem:[%s360 + $0x58] sm:$0xff] %v764
        %781 = vst [vmem:[%s360 + $0x60] sm:$0xff] %v765
        %782 = vst [vmem:[%s360 + $0x68] sm:$0xff] %v766
        %783 = vst [vmem:[%s360 + $0x70] sm:$0xff] %v767
        %784 = vst [vmem:[%s360 + $0x78] sm:$0xff] %v768
        %v785 = vpack.c.bf16 %v757, %v753
        %v786 = vpack.c.bf16 %v758, %v754
        %v787 = vpack.c.bf16 %v759, %v755
        %v788 = vpack.c.bf16 %v760, %v756
        %v789 = vpack.c.bf16 %v765, %v761
        %v790 = vpack.c.bf16 %v766, %v762
        %v791 = vpack.c.bf16 %v767, %v763
        %v792 = vpack.c.bf16 %v768, %v764
        %v793 = vld [vmem:[#allocation5] sm:$0xf]
        %v794 = vld [vmem:[#allocation5 + $0x4] sm:$0xf]
        %v795 = vld [vmem:[#allocation5 + $0x8] sm:$0xf]
        %v796 = vld [vmem:[#allocation5 + $0xc] sm:$0xf]
        %v797 = vld [vmem:[#allocation5 + $0x10] sm:$0xf]
        %v798 = vld [vmem:[#allocation5 + $0x14] sm:$0xf]
        %v799 = vld [vmem:[#allocation5 + $0x18] sm:$0xf]
        %v800 = vld [vmem:[#allocation5 + $0x1c] sm:$0xf]
        %v801 = vld [vmem:[#allocation5 + $0x20] sm:$0xf]
        %v802 = vld [vmem:[#allocation5 + $0x24] sm:$0xf]
        %v803 = vld [vmem:[#allocation5 + $0x28] sm:$0xf]
        %v804 = vld [vmem:[#allocation5 + $0x2c] sm:$0xf]
        %v805 = vld [vmem:[#allocation5 + $0x30] sm:$0xf]
        %v806 = vld [vmem:[#allocation5 + $0x34] sm:$0xf]
        %v807 = vld [vmem:[#allocation5 + $0x38] sm:$0xf]
        %v808 = vld [vmem:[#allocation5 + $0x3c] sm:$0xf]
        %v809 = vld [vmem:[#allocation5 + $0x40] sm:$0xf]
        %v810 = vld [vmem:[#allocation5 + $0x44] sm:$0xf]
        %v811 = vld [vmem:[#allocation5 + $0x48] sm:$0xf]
        %v812 = vld [vmem:[#allocation5 + $0x4c] sm:$0xf]
        %v813 = vld [vmem:[#allocation5 + $0x50] sm:$0xf]
        %v814 = vld [vmem:[#allocation5 + $0x54] sm:$0xf]
        %v815 = vld [vmem:[#allocation5 + $0x58] sm:$0xf]
        %v816 = vld [vmem:[#allocation5 + $0x5c] sm:$0xf]
        %v817 = vld [vmem:[#allocation5 + $0x60] sm:$0xf]
        %v818 = vld [vmem:[#allocation5 + $0x64] sm:$0xf]
        %v819 = vld [vmem:[#allocation5 + $0x68] sm:$0xf]
        %v820 = vld [vmem:[#allocation5 + $0x6c] sm:$0xf]
        %v821 = vld [vmem:[#allocation5 + $0x70] sm:$0xf]
        %v822 = vld [vmem:[#allocation5 + $0x74] sm:$0xf]
        %v823 = vld [vmem:[#allocation5 + $0x78] sm:$0xf]
        %v824 = vld [vmem:[#allocation5 + $0x7c] sm:$0xf]
        %v825 = vld [vmem:[#allocation5 + $0x80] sm:$0xf]
        %v826 = vld [vmem:[#allocation5 + $0x84] sm:$0xf]
        %v827 = vld [vmem:[#allocation5 + $0x88] sm:$0xf]
        %v828 = vld [vmem:[#allocation5 + $0x8c] sm:$0xf]
        %v829 = vld [vmem:[#allocation5 + $0x90] sm:$0xf]
        %v830 = vld [vmem:[#allocation5 + $0x94] sm:$0xf]
        %v831 = vld [vmem:[#allocation5 + $0x98] sm:$0xf]
        %v832 = vld [vmem:[#allocation5 + $0x9c] sm:$0xf]
        %v833 = vld [vmem:[#allocation5 + $0xa0] sm:$0xf]
        %v834 = vld [vmem:[#allocation5 + $0xa4] sm:$0xf]
        %v835 = vld [vmem:[#allocation5 + $0xa8] sm:$0xf]
        %v836 = vld [vmem:[#allocation5 + $0xac] sm:$0xf]
        %v837 = vld [vmem:[#allocation5 + $0xb0] sm:$0xf]
        %v838 = vld [vmem:[#allocation5 + $0xb4] sm:$0xf]
        %v839 = vld [vmem:[#allocation5 + $0xb8] sm:$0xf]
        %v840 = vld [vmem:[#allocation5 + $0xbc] sm:$0xf]
        %v841 = vld [vmem:[#allocation5 + $0xc0] sm:$0xf]
        %v842 = vld [vmem:[#allocation5 + $0xc4] sm:$0xf]
        %v843 = vld [vmem:[#allocation5 + $0xc8] sm:$0xf]
        %v844 = vld [vmem:[#allocation5 + $0xcc] sm:$0xf]
        %v845 = vld [vmem:[#allocation5 + $0xd0] sm:$0xf]
        %v846 = vld [vmem:[#allocation5 + $0xd4] sm:$0xf]
        %v847 = vld [vmem:[#allocation5 + $0xd8] sm:$0xf]
        %v848 = vld [vmem:[#allocation5 + $0xdc] sm:$0xf]
        %v849 = vld [vmem:[#allocation5 + $0xe0] sm:$0xf]
        %v850 = vld [vmem:[#allocation5 + $0xe4] sm:$0xf]
        %v851 = vld [vmem:[#allocation5 + $0xe8] sm:$0xf]
        %v852 = vld [vmem:[#allocation5 + $0xec] sm:$0xf]
        %v853 = vld [vmem:[#allocation5 + $0xf0] sm:$0xf]
        %v854 = vld [vmem:[#allocation5 + $0xf4] sm:$0xf]
        %v855 = vld [vmem:[#allocation5 + $0xf8] sm:$0xf]
        %v856 = vld [vmem:[#allocation5 + $0xfc] sm:$0xf]
        %v857 = vld [vmem:[%s6] sm:$0x1]
        %v859 = vperm.slane %v857, 0
        %v925 = vunpack.c.l.b16 %v793
        %v926 = vunpack.c.l.b16 %v794
        %v927 = vunpack.c.l.b16 %v795
        %v928 = vunpack.c.l.b16 %v796
        %v929 = vunpack.c.l.b16 %v797
        %v930 = vunpack.c.l.b16 %v798
        %v931 = vunpack.c.l.b16 %v799
        %v932 = vunpack.c.l.b16 %v800
        %v933 = vunpack.c.l.b16 %v801
        %v934 = vunpack.c.l.b16 %v802
        %v935 = vunpack.c.l.b16 %v803
        %v936 = vunpack.c.l.b16 %v804
        %v937 = vunpack.c.l.b16 %v805
        %v938 = vunpack.c.l.b16 %v806
        %v939 = vunpack.c.l.b16 %v807
        %v940 = vunpack.c.l.b16 %v808
        %v941 = vunpack.c.l.b16 %v809
        %v942 = vunpack.c.l.b16 %v810
        %v943 = vunpack.c.l.b16 %v811
        %v944 = vunpack.c.l.b16 %v812
        %v945 = vunpack.c.l.b16 %v813
        %v946 = vunpack.c.l.b16 %v814
        %v947 = vunpack.c.l.b16 %v815
        %v948 = vunpack.c.l.b16 %v816
        %v949 = vunpack.c.l.b16 %v817
        %v950 = vunpack.c.l.b16 %v818
        %v951 = vunpack.c.l.b16 %v819
        %v952 = vunpack.c.l.b16 %v820
        %v953 = vunpack.c.l.b16 %v821
        %v954 = vunpack.c.l.b16 %v822
        %v955 = vunpack.c.l.b16 %v823
        %v956 = vunpack.c.l.b16 %v824
        %v957 = vunpack.c.l.b16 %v825
        %v958 = vunpack.c.l.b16 %v826
        %v959 = vunpack.c.l.b16 %v827
        %v960 = vunpack.c.l.b16 %v828
        %v961 = vunpack.c.l.b16 %v829
        %v962 = vunpack.c.l.b16 %v830
        %v963 = vunpack.c.l.b16 %v831
        %v964 = vunpack.c.l.b16 %v832
        %v965 = vunpack.c.l.b16 %v833
        %v966 = vunpack.c.l.b16 %v834
        %v967 = vunpack.c.l.b16 %v835
        %v968 = vunpack.c.l.b16 %v836
        %v969 = vunpack.c.l.b16 %v837
        %v970 = vunpack.c.l.b16 %v838
        %v971 = vunpack.c.l.b16 %v839
        %v972 = vunpack.c.l.b16 %v840
        %v973 = vunpack.c.l.b16 %v841
        %v974 = vunpack.c.l.b16 %v842
        %v975 = vunpack.c.l.b16 %v843
        %v976 = vunpack.c.l.b16 %v844
        %v977 = vunpack.c.l.b16 %v845
        %v978 = vunpack.c.l.b16 %v846
        %v979 = vunpack.c.l.b16 %v847
        %v980 = vunpack.c.l.b16 %v848
        %v981 = vunpack.c.l.b16 %v849
        %v982 = vunpack.c.l.b16 %v850
        %v983 = vunpack.c.l.b16 %v851
        %v984 = vunpack.c.l.b16 %v852
        %v985 = vunpack.c.l.b16 %v853
        %v986 = vunpack.c.l.b16 %v854
        %v987 = vunpack.c.l.b16 %v855
        %v988 = vunpack.c.l.b16 %v856
        %v989 = vpack.c.b16 %v926, %v925
        %v990 = vpack.c.b16 %v928, %v927
        %v991 = vpack.c.b16 %v930, %v929
        %v992 = vpack.c.b16 %v932, %v931
        %v993 = vpack.c.b16 %v934, %v933
        %v994 = vpack.c.b16 %v936, %v935
        %v995 = vpack.c.b16 %v938, %v937
        %v996 = vpack.c.b16 %v940, %v939
        %v997 = vpack.c.b16 %v942, %v941
        %v998 = vpack.c.b16 %v944, %v943
        %v999 = vpack.c.b16 %v946, %v945
        %v1000 = vpack.c.b16 %v948, %v947
        %v1001 = vpack.c.b16 %v950, %v949
        %v1002 = vpack.c.b16 %v952, %v951
        %v1003 = vpack.c.b16 %v954, %v953
        %v1004 = vpack.c.b16 %v956, %v955
        %v1005 = vpack.c.b16 %v958, %v957
        %v1006 = vpack.c.b16 %v960, %v959
        %v1007 = vpack.c.b16 %v962, %v961
        %v1008 = vpack.c.b16 %v964, %v963
        %v1009 = vpack.c.b16 %v966, %v965
        %v1010 = vpack.c.b16 %v968, %v967
        %v1011 = vpack.c.b16 %v970, %v969
        %v1012 = vpack.c.b16 %v972, %v971
        %v1013 = vpack.c.b16 %v974, %v973
        %v1014 = vpack.c.b16 %v976, %v975
        %v1015 = vpack.c.b16 %v978, %v977
        %v1016 = vpack.c.b16 %v980, %v979
        %v1017 = vpack.c.b16 %v982, %v981
        %v1018 = vpack.c.b16 %v984, %v983
        %v1019 = vpack.c.b16 %v986, %v985
        %v1020 = vpack.c.b16 %v988, %v987
        %1053 = vmatpush.bf16.msra.mxu0 %v996
        %1054 = vmatpush.bf16.msra.mxu0 %v995
        %1055 = vmatpush.bf16.msra.mxu0 %v994
        %1056 = vmatpush.bf16.msra.mxu0 %v993
        %1057 = vmatpush.bf16.msra.mxu0 %v992
        %1058 = vmatpush.bf16.msra.mxu0 %v991
        %1059 = vmatpush.bf16.msra.mxu0 %v990
        %1060 = vmatpush.bf16.msra.mxu0 %v989
        %1061 = vmatmul.bf16.gmra.mxu0 %v785
        %v1062 = vpop.f32.mrf.mxu0
        %v1063 = vadd.f32 %v859, %v1062
        %v1064 = vpop.f32.mrf.mxu0
        %v1065 = vadd.f32 %v859, %v1064
        %1066 = vmatmul.bf16.gmra.mxu0 %v789
        %v1067 = vpop.f32.mrf.mxu0
        %v1068 = vadd.f32 %v859, %v1067
        %v1069 = vpop.f32.mrf.mxu0
        %v1070 = vadd.f32 %v859, %v1069
        %1071 = vdwg.mxu0
        %1072 = vmatpush.bf16.msra.mxu0 %v1004
        %1073 = vmatpush.bf16.msra.mxu0 %v1003
        %1074 = vmatpush.bf16.msra.mxu0 %v1002
        %1075 = vmatpush.bf16.msra.mxu0 %v1001
        %1076 = vmatpush.bf16.msra.mxu0 %v1000
        %1077 = vmatpush.bf16.msra.mxu0 %v999
        %1078 = vmatpush.bf16.msra.mxu0 %v998
        %1079 = vmatpush.bf16.msra.mxu0 %v997
        %1080 = vmatmul.bf16.gmra.mxu0 %v786
        %v1081 = vpop.f32.mrf.mxu0
        %v1082 = vadd.f32 %v1063, %v1081
        %v1083 = vpop.f32.mrf.mxu0
        %v1084 = vadd.f32 %v1065, %v1083
        %1085 = vmatmul.bf16.gmra.mxu0 %v790
        %v1086 = vpop.f32.mrf.mxu0
        %v1087 = vadd.f32 %v1068, %v1086
        %v1088 = vpop.f32.mrf.mxu0
        %v1089 = vadd.f32 %v1070, %v1088
        %1090 = vdwg.mxu0
        %1091 = vmatpush.bf16.msra.mxu0 %v1012
        %1092 = vmatpush.bf16.msra.mxu0 %v1011
        %1093 = vmatpush.bf16.msra.mxu0 %v1010
        %1094 = vmatpush.bf16.msra.mxu0 %v1009
        %1095 = vmatpush.bf16.msra.mxu0 %v1008
        %1096 = vmatpush.bf16.msra.mxu0 %v1007
        %1097 = vmatpush.bf16.msra.mxu0 %v1006
        %1098 = vmatpush.bf16.msra.mxu0 %v1005
        %1099 = vmatmul.bf16.gmra.mxu0 %v787
        %v1100 = vpop.f32.mrf.mxu0
        %v1101 = vadd.f32 %v1082, %v1100
        %v1102 = vpop.f32.mrf.mxu0
        %v1103 = vadd.f32 %v1084, %v1102
        %1104 = vmatmul.bf16.gmra.mxu0 %v791
        %v1105 = vpop.f32.mrf.mxu0
        %v1106 = vadd.f32 %v1087, %v1105
        %v1107 = vpop.f32.mrf.mxu0
        %v1108 = vadd.f32 %v1089, %v1107
        %1109 = vdwg.mxu0
        %1110 = vmatpush.bf16.msra.mxu0 %v1020
        %1111 = vmatpush.bf16.msra.mxu0 %v1019
        %1112 = vmatpush.bf16.msra.mxu0 %v1018
        %1113 = vmatpush.bf16.msra.mxu0 %v1017
        %1114 = vmatpush.bf16.msra.mxu0 %v1016
        %1115 = vmatpush.bf16.msra.mxu0 %v1015
        %1116 = vmatpush.bf16.msra.mxu0 %v1014
        %1117 = vmatpush.bf16.msra.mxu0 %v1013
        %1118 = vmatmul.bf16.gmra.mxu0 %v788
        %v1119 = vpop.f32.mrf.mxu0
        %v1120 = vadd.f32 %v1101, %v1119
        %v1121 = vpop.f32.mrf.mxu0
        %v1122 = vadd.f32 %v1103, %v1121
        %1123 = vmatmul.bf16.gmra.mxu0 %v792
        %v1124 = vpop.f32.mrf.mxu0
        %v1125 = vadd.f32 %v1106, %v1124
        %v1126 = vpop.f32.mrf.mxu0
        %v1127 = vadd.f32 %v1108, %v1126
        %1128 = vdwg.mxu0
        %1129 = vst [vmem:[%s353] sm:$0xff] %v1120
        %1130 = vst [vmem:[%s353 + $0x8] sm:$0xff] %v1122
        %1131 = vst [vmem:[%s353 + $0x10] sm:$0xff] %v1125
        %1132 = vst [vmem:[%s353 + $0x18] sm:$0xff] %v1127
        %s1133 = sand.u32 %s193, 1
        %s1134 = scalar_lea.sflag [#allocation4], %s1133
        %s1135 = sand.u32 %s193, 1
        %s1136 = smul.addr %s1135, 32
        %s1137 = scalar_lea.vmem [#allocation7], %s1136
        %s1138 = sand.u32 %s219, 1
        %s1139 = scalar_lea.sflag [#allocation9], %s1138
        %s1140 = sand.u32 %s219, 1
        %s1141 = smul.addr %s1140, 128
        %s1142 = scalar_lea.vmem [#allocation8], %s1141
        // Predicated region
        $region57: #{tpu_custom_call.1} parent=47 // pred_check
          %p1143 = pneg %p203
        $region58: #{tpu_custom_call.1} parent=47 // pred_check_branch
          %1145 = sbr.rel (%p1143) target = $region60
        $region59: #{tpu_custom_call.1} parent=47 // pred_region
          %s1146 = smul.u32 4, %s28
          %1148 = vsyncadd %s1134, 0
          %s1149 = smul.addr %s1146, 8
          %s1150 = scalar_lea.hbm %s7, %s1149
          %s1151 = sshll.u32 %s1137, 4
          %s1152 = int_to_ptr.vmem [resolvable:$true] %s1151
          %s1153 = sshll.u32 %s1150, 4
          %s1154 = int_to_ptr.hbm [resolvable:$true] %s1153
          %1159 = dma.vmem_to_hbm [thread:$0]  %s1152, 512, %s1154, %s1134, 128, 128, 8
        $region60: #{tpu_custom_call.1} parent=47 // pred_fallthru
          _
        // Predicated region
        $region61: #{tpu_custom_call.1} parent=47 // pred_check
          %p1160 = pneg %p229
        $region62: #{tpu_custom_call.1} parent=47 // pred_check_branch
          %1162 = sbr.rel (%p1160) target = $region64
        $region63: #{tpu_custom_call.1} parent=47 // pred_region
          %s1163 = smul.u32 4, %s28
          %1165 = vsyncadd %s1139, 0
          %s1166 = smul.addr %s1163, 4
          %s1167 = smul.addr %s1166, 8
          %s1168 = scalar_lea.hbm %s8, %s1167
          %s1169 = sshll.u32 %s1142, 4
          %s1170 = int_to_ptr.vmem [resolvable:$true] %s1169
          %s1171 = sshll.u32 %s1168, 4
          %s1172 = int_to_ptr.hbm [resolvable:$true] %s1171
          %1177 = dma.vmem_to_hbm [thread:$0]  %s1170, 2048, %s1172, %s1139, 512, 512, 32
        $region64: #{tpu_custom_call.1} parent=47 // pred_fallthru
          _
      $region48: #{tpu_custom_call.1} parent=5 // pred_fallthru
        _
      %p1178 = scmp.le.s32.totalorder 2, %s23
      // Predicated region
      $region65: #{tpu_custom_call.1} parent=5 // pred_check
        %p1179 = pneg %p1178
      $region66: #{tpu_custom_call.1} parent=5 // pred_check_branch
        %1181 = sbr.rel (%p1179) target = $region68
      $region67: #{tpu_custom_call.1} parent=5 // pred_region
        %s1182 = ssub.s32 %s23, 2
        // Predicated region
        $region69: #{tpu_custom_call.1} parent=67 // pred_check
          %p1183 = pneg %p209
        $region70: #{tpu_custom_call.1} parent=67 // pred_check_branch
          %1185 = sbr.rel (%p1183) target = $region72
        $region71: #{tpu_custom_call.1} parent=67 // pred_region
          %s1186 = sand.u32 %s194, 1
          %s1187 = scalar_lea.sflag [#allocation4], %s1186
          %s1188 = sand.u32 %s194, 1
          %s1189 = smul.addr %s1188, 32
          %s1190 = scalar_lea.vmem [#allocation7], %s1189
          %1192 = dma.done %s1187, 512
        $region72: #{tpu_custom_call.1} parent=67 // pred_fallthru
          _
        // Predicated region
        $region73: #{tpu_custom_call.1} parent=67 // pred_check
          %p1193 = pneg %p235
        $region74: #{tpu_custom_call.1} parent=67 // pred_check_branch
          %1195 = sbr.rel (%p1193) target = $region76
        $region75: #{tpu_custom_call.1} parent=67 // pred_region
          %s1196 = sand.u32 %s220, 1
          %s1197 = scalar_lea.sflag [#allocation9], %s1196
          %s1198 = sand.u32 %s220, 1
          %s1199 = smul.addr %s1198, 128
          %s1200 = scalar_lea.vmem [#allocation8], %s1199
          %1202 = dma.done %s1197, 2048
        $region76: #{tpu_custom_call.1} parent=67 // pred_fallthru
          _
      $region68: #{tpu_custom_call.1} parent=5 // pred_fallthru
        _
    $region6: #{tpu_custom_call.1} parent=1 // loop_footer
      %s27 = sadd.s32 1, %s23
    $region7: #{tpu_custom_call.1} parent=1 // loop_footer_branch
      %22 = sbr.rel target = $region3
    $region8: #{tpu_custom_call.1} parent=1 // loop_exit
      _
    %1203 = vsyncpa [#allocation3], 1
    %s1204 = scalar_lea.sflag [#allocation3], 1
    %1205 = vsyncpa %s1204, 1
    %1206 = vsyncpa [#allocation6], 1
    %1207 = vsyncpa [#allocation4], 1
    %s1208 = scalar_lea.sflag [#allocation4], 1
    %1209 = vsyncpa %s1208, 1
    %1210 = vsyncpa [#allocation9], 1
    %s1211 = scalar_lea.sflag [#allocation9], 1
    %1212 = vsyncpa %s1211, 1

</llo_original>
